<compile_context>
chip_gen: v6e
topology: v6e:2x2x1
jax: 0.10.0
libtpu: 0.0.40
codegen_flags: <defaults>
</compile_context>

<pallas_src>
import functools

import jax
import jax.numpy as jnp
from jax import lax
from jax.experimental import pallas as pl
from jax.experimental.pallas import tpu as pltpu

# Deterministic "start()" parameters from the module.
T_A = -2.5
T_B = 700.0
LN_EPS = 1e-5
LANE = 128


def mole_kernel(xp_ref,
                w1_ref, b1_ref, w2_ref, b2_ref, w3_ref, b3_ref, w4_ref, b4_ref,
                o_ref, xf_ref, *, f_src, act_dtype):
    # --- assemble the LayerNorm input [F, TN] in VMEM scratch (fused "concat") -----
    xf_ref[0:f_src, :] = xp_ref[0:f_src, :]
    t = xp_ref[f_src:f_src + 1, :]                         # raw T          [1, TN]
    t100 = t * 0.01                                        # T / 100
    pinv = 1.0 / xp_ref[f_src + 1:f_src + 2, :]            # 1 / P
    xf_ref[f_src:f_src + 1, :] = t100
    xf_ref[f_src + 1:f_src + 2, :] = pinv
    xf_ref[f_src + 2:f_src + 3, :] = t100 * pinv
    xf = xf_ref[...]                                       # [F, TN]

    # --- LayerNorm over the feature (sublane) axis: biased var, eps inside rsqrt ---
    inv_f = 1.0 / xf.shape[0]
    mean = jnp.sum(xf, axis=0, keepdims=True) * inv_f
    xc = xf - mean
    var = jnp.sum(xc * xc, axis=0, keepdims=True) * inv_f
    xn = xc * lax.rsqrt(var + LN_EPS)                      # gamma/beta folded into W1/b1

    # --- MLP F -> 18 -> 7 -> 5 -> 1, Tanh after every Linear (column layout) -------
    h = jnp.tanh((jnp.dot(w1_ref[...], xn, preferred_element_type=jnp.float32)
                  + b1_ref[...]).astype(act_dtype))                          # [18, TN]
    h = jnp.tanh((jnp.dot(w2_ref[...], h, preferred_element_type=jnp.float32)
                  + b2_ref[...]).astype(act_dtype))                          # [7,  TN]
    h = jnp.tanh((jnp.dot(w3_ref[...], h, preferred_element_type=jnp.float32)
                  + b3_ref[...]).astype(act_dtype))                          # [5,  TN]
    # last 5 -> 1 layer: VPU multiply-reduce, kept in f32
    h4 = jnp.tanh(jnp.sum(w4_ref[...] * h.astype(jnp.float32), axis=0, keepdims=True)
                  + b4_ref[...])                                             # [1,  TN]

    # y_1 = mlp(x) * 18 + T_a * sigmoid(T - T_b);  out = 28 + y_1  (lane-dense store)
    o_ref[...] = 28.0 + h4 * 18.0 + T_A * jax.nn.sigmoid(t - T_B)


def mole_forward(x, T, P, params, *, tile_n=32768, activation_dtype=jnp.float32):
    """x: [N, source_nums]; T, P: [1, N]; params: dict of layer weights.

    Returns [N, 1] (as in the PyTorch module).  activation_dtype=jnp.bfloat16 enables
    the faster approximate tanh chain (v6e/v7x EUP lever); default f32 is exact.
    """
    n, f_src = x.shape
    feat = f_src + 3

    # Single fused pack: [x^T ; T ; P] -> one [F_src + 2, N] HBM array.  (If the
    # producer can already emit this packed/transposed layout, pass it directly and
    # this wrapper op becomes free.)
    xpack = jnp.concatenate(
        [x.astype(jnp.float32).T,
         T.astype(jnp.float32).reshape(1, n),
         P.astype(jnp.float32).reshape(1, n)], axis=0)      # [F_src + 2, N]
    f_pack = f_src + 2

    # Lane tiling over samples.  No explicit padding: Pallas clips the partial last
    # block; kernel math never crosses lanes, so tail-lane garbage is harmless.
    tile_n = max(LANE, (int(tile_n) // LANE) * LANE)
    tile_n = min(tile_n, pl.cdiv(n, LANE) * LANE)
    grid = (pl.cdiv(n, tile_n),)

    # Fold LayerNorm gamma/beta into the first Linear (exact identity) and move
    # weights to column layout ([out, in]); biases as [out, 1] columns.
    f32 = lambda a: a.astype(jnp.float32)
    g, b = f32(params["ln_g"]), f32(params["ln_b"])
    w1, b1 = f32(params["w1"]), f32(params["b1"])
    w1t = (g[:, None] * w1).T                               # [18, F]
    b1c = (b @ w1 + b1).reshape(-1, 1)                      # [18, 1]
    act = activation_dtype
    w2t = f32(params["w2"]).T.astype(act)                   # [7, 18]  (act dtype)
    b2c = f32(params["b2"]).reshape(-1, 1)                  # [7, 1]
    w3t = f32(params["w3"]).T.astype(act)                   # [5, 7]   (act dtype)
    b3c = f32(params["b3"]).reshape(-1, 1)                  # [5, 1]
    w4c = f32(params["w4"])                                 # [5, 1]
    b4c = f32(params["b4"]).reshape(-1, 1)                  # [1, 1]

    lane_tiled = lambda rows: pl.BlockSpec((rows, tile_n), lambda i: (0, i))
    const = lambda a: pl.BlockSpec(a.shape, lambda i: (0, 0))

    # Per-step VMEM footprint estimate (double-buffered I/O + f32 intermediates).
    # Default tile (32K) -> ~8 MiB, so a 32 MiB scoped limit is always safe; only go
    # higher for user-supplied huge tiles (keep tile_n <= ~32768 on v7x / 64 MiB parts).
    per_step = 4 * tile_n * (2 * (f_pack + 1) + feat + 18 + 7 + 5 + 8)
    vmem_limit = int(min(max(32 << 20, 3 * per_step), 112 << 20))

    cost = pl.CostEstimate(
        flops=2 * n * (feat * 18 + 18 * 7 + 7 * 5 + 5) + 12 * n * feat,
        transcendentals=n * 34,                             # tanh(18+7+5+1)+sigmoid+rsqrt+recip
        bytes_accessed=4 * n * (f_pack + 1),
    )

    kernel = functools.partial(mole_kernel, f_src=f_src, act_dtype=activation_dtype)

    out = pl.pallas_call(
        kernel,
        out_shape=jax.ShapeDtypeStruct((1, n), jnp.float32),
        grid=grid,
        in_specs=[
            lane_tiled(f_pack),                             # packed [x^T ; T ; P]
            const(w1t), const(b1c),
            const(w2t), const(b2c),
            const(w3t), const(b3c),
            const(w4c), const(b4c),
        ],
        out_specs=lane_tiled(1),
        scratch_shapes=[pltpu.VMEM((feat, tile_n), jnp.float32)],
        compiler_params=pltpu.CompilerParams(
            dimension_semantics=("parallel",),
            vmem_limit_bytes=vmem_limit),
        cost_estimate=cost,
    )(xpack, w1t, b1c, w2t, b2c, w3t, b3c, w4c, b4c)

    return out.T                                            # [N, 1]


def make_params(key, source_nums):
    feat = source_nums + 3
    dims = [(feat, 18), (18, 7), (7, 5), (5, 1)]
    keys = jax.random.split(key, 2 * len(dims) + 2)
    params = {
        # Non-trivial gamma/beta so the W1 folding is actually exercised.
        "ln_g": 1.0 + 0.1 * jax.random.normal(keys[-2], (feat,), jnp.float32),
        "ln_b": 0.1 * jax.random.normal(keys[-1], (feat,), jnp.float32),
    }
    for idx, (din, dout) in enumerate(dims):
        bound = 1.0 / jnp.sqrt(float(din))
        params[f"w{idx + 1}"] = jax.random.uniform(keys[2 * idx], (din, dout), jnp.float32, -bound, bound)
        params[f"b{idx + 1}"] = jax.random.uniform(keys[2 * idx + 1], (dout,), jnp.float32, -bound, bound)
    return params


def mole_reference(x, T, P, params):
    """Pure-JAX reference mirroring the PyTorch forward (un-folded gamma/beta)."""
    t_col = T.T.astype(jnp.float32) / 100.0
    p_inv = 1.0 / P.T.astype(jnp.float32)
    xc = jnp.concatenate([x.astype(jnp.float32), t_col, p_inv, t_col * p_inv], axis=1)
    mean = jnp.mean(xc, axis=-1, keepdims=True)
    var = jnp.mean((xc - mean) ** 2, axis=-1, keepdims=True)
    h = (xc - mean) / jnp.sqrt(var + LN_EPS)
    h = h * params["ln_g"] + params["ln_b"]
    for i in range(1, 5):
        h = jnp.tanh(h @ params[f"w{i}"] + params[f"b{i}"])
    y1 = h * 18.0 + T_A * jax.nn.sigmoid(T.T - T_B)
    return 28.0 + y1


if __name__ == "__main__":
    source_nums = 5               # -> feature dim = source_nums + 3 = 8
    relation_nums = 4             # unused by forward (as in the PyTorch module)
    n = 256                       # number of samples; arbitrary N supported (partial last block)

    key = jax.random.PRNGKey(0)
    kx, kt, kp, kw = jax.random.split(key, 4)
    x = jax.random.normal(kx, (n, source_nums), jnp.float32)
    T = 600.0 + 50.0 * jax.random.normal(kt, (1, n), jnp.float32)    # temperatures
    P = 1.0 + jax.random.uniform(kp, (1, n), jnp.float32)            # pressures (>0)

    params = make_params(kw, source_nums)
    ref = mole_reference(x, T, P, params)

    # Exact (f32) path — matches the PyTorch forward numerics.
    out = jax.block_until_ready(mole_forward(x, T, P, params))
    assert out.shape == (n, 1)
    assert jnp.allclose(out, ref, atol=1e-4, rtol=1e-4), "f32 kernel mismatch vs reference"

    # Fast bf16-activation path (v6e/v7x EUP lever) — approximate by construction,
    # checked against a loose tolerance.
    out_bf16 = jax.block_until_ready(
        mole_forward(x, T, P, params, activation_dtype=jnp.bfloat16))
    assert out_bf16.shape == (n, 1)
    assert float(jnp.max(jnp.abs(out_bf16 - ref))) < 0.5, "bf16 kernel diverged from reference"

    print("KERNEL_OK")
</pallas_src>

<mosaic_0001>
module attributes {stable_mosaic.version = 11 : i64} {
  func.func @mole_kernel(%arg0: i32, %arg1: memref<7x256xf32, #tpu.memory_space<vmem>>, %arg2: memref<18x8xf32, #tpu.memory_space<vmem>>, %arg3: memref<18x1xf32, #tpu.memory_space<vmem>>, %arg4: memref<7x18xf32, #tpu.memory_space<vmem>>, %arg5: memref<7x1xf32, #tpu.memory_space<vmem>>, %arg6: memref<5x7xf32, #tpu.memory_space<vmem>>, %arg7: memref<5x1xf32, #tpu.memory_space<vmem>>, %arg8: memref<5x1xf32, #tpu.memory_space<vmem>>, %arg9: memref<1x1xf32, #tpu.memory_space<vmem>>, %arg10: memref<1x256xf32, #tpu.memory_space<vmem>>, %arg11: memref<8x256xf32, #tpu.memory_space<vmem>>) attributes {dimension_semantics = [#tpu.dimension_semantics<parallel>], iteration_bounds = array<i64: 1>, scalar_prefetch = 0 : i64, scratch_operands = 1 : i64, tpu.core_type = #tpu.core_type<tc>, window_params = [{transform_indices = @transform_0, window_bounds = array<i64: 7, 256>}, {pipeline_mode = #tpu.pipeline_mode<synchronous>, transform_indices = @transform_1, window_bounds = array<i64: 18, 8>}, {pipeline_mode = #tpu.pipeline_mode<synchronous>, transform_indices = @transform_2, window_bounds = array<i64: 18, 1>}, {pipeline_mode = #tpu.pipeline_mode<synchronous>, transform_indices = @transform_3, window_bounds = array<i64: 7, 18>}, {pipeline_mode = #tpu.pipeline_mode<synchronous>, transform_indices = @transform_4, window_bounds = array<i64: 7, 1>}, {pipeline_mode = #tpu.pipeline_mode<synchronous>, transform_indices = @transform_5, window_bounds = array<i64: 5, 7>}, {pipeline_mode = #tpu.pipeline_mode<synchronous>, transform_indices = @transform_6, window_bounds = array<i64: 5, 1>}, {pipeline_mode = #tpu.pipeline_mode<synchronous>, transform_indices = @transform_7, window_bounds = array<i64: 5, 1>}, {pipeline_mode = #tpu.pipeline_mode<synchronous>, transform_indices = @transform_8, window_bounds = array<i64: 1, 1>}, {transform_indices = @transform_9, window_bounds = array<i64: 1, 256>}]} {
    %c0 = arith.constant 0 : index
    %c0_0 = arith.constant 0 : index
    %0 = vector.load %arg1[%c0, %c0_0] : memref<7x256xf32, #tpu.memory_space<vmem>>, vector<5x256xf32>
    %c0_1 = arith.constant 0 : index
    %c0_2 = arith.constant 0 : index
    %1 = vector.load %arg11[%c0_1, %c0_2] : memref<8x256xf32, #tpu.memory_space<vmem>>, vector<5x256xf32>
    tpu.vector_store %arg11[%c0_1, %c0_2], %0 {strides = array<i32>} : memref<8x256xf32, #tpu.memory_space<vmem>>, vector<5x256xf32>,
    %c5 = arith.constant 5 : index
    %c0_3 = arith.constant 0 : index
    %2 = vector.load %arg1[%c5, %c0_3] : memref<7x256xf32, #tpu.memory_space<vmem>>, vector<1x256xf32>
    %cst = arith.constant 0.00999999977 : f32
    %3 = vector.broadcast %cst : f32 to vector<1x256xf32>
    %4 = arith.mulf %2, %3 : vector<1x256xf32>
    %c6 = arith.constant 6 : index
    %c0_4 = arith.constant 0 : index
    %5 = vector.load %arg1[%c6, %c0_4] : memref<7x256xf32, #tpu.memory_space<vmem>>, vector<1x256xf32>
    %cst_5 = arith.constant 1.000000e+00 : f32
    %6 = vector.broadcast %cst_5 : f32 to vector<1x256xf32>
    %7 = arith.divf %6, %5 : vector<1x256xf32>
    %c5_6 = arith.constant 5 : index
    %c0_7 = arith.constant 0 : index
    %8 = vector.load %arg11[%c5_6, %c0_7] : memref<8x256xf32, #tpu.memory_space<vmem>>, vector<1x256xf32>
    tpu.vector_store %arg11[%c5_6, %c0_7], %4 {strides = array<i32>} : memref<8x256xf32, #tpu.memory_space<vmem>>, vector<1x256xf32>,
    %c6_8 = arith.constant 6 : index
    %c0_9 = arith.constant 0 : index
    %9 = vector.load %arg11[%c6_8, %c0_9] : memref<8x256xf32, #tpu.memory_space<vmem>>, vector<1x256xf32>
    tpu.vector_store %arg11[%c6_8, %c0_9], %7 {strides = array<i32>} : memref<8x256xf32, #tpu.memory_space<vmem>>, vector<1x256xf32>,
    %10 = arith.mulf %4, %7 : vector<1x256xf32>
    %c7 = arith.constant 7 : index
    %c0_10 = arith.constant 0 : index
    %11 = vector.load %arg11[%c7, %c0_10] : memref<8x256xf32, #tpu.memory_space<vmem>>, vector<1x256xf32>
    tpu.vector_store %arg11[%c7, %c0_10], %10 {strides = array<i32>} : memref<8x256xf32, #tpu.memory_space<vmem>>, vector<1x256xf32>,
    %c0_11 = arith.constant 0 : index
    %c0_12 = arith.constant 0 : index
    %12 = vector.load %arg11[%c0_11, %c0_12] : memref<8x256xf32, #tpu.memory_space<vmem>>, vector<8x256xf32>
    %cst_13 = arith.constant dense<0.000000e+00> : vector<256xf32>
    %13 = vector.multi_reduction <add>, %12, %cst_13 [0] : vector<8x256xf32> to vector<256xf32>
    %14 = vector.shape_cast %13 : vector<256xf32> to vector<1x256xf32>
    %cst_14 = arith.constant 1.250000e-01 : f32
    %15 = vector.broadcast %cst_14 : f32 to vector<1x256xf32>
    %16 = arith.mulf %14, %15 : vector<1x256xf32>
    %17 = vector.broadcast %16 : vector<1x256xf32> to vector<8x256xf32>
    %18 = arith.subf %12, %17 : vector<8x256xf32>
    %19 = arith.mulf %18, %18 : vector<8x256xf32>
    %cst_15 = arith.constant dense<0.000000e+00> : vector<256xf32>
    %20 = vector.multi_reduction <add>, %19, %cst_15 [0] : vector<8x256xf32> to vector<256xf32>
    %21 = vector.shape_cast %20 : vector<256xf32> to vector<1x256xf32>
    %cst_16 = arith.constant 1.250000e-01 : f32
    %22 = vector.broadcast %cst_16 : f32 to vector<1x256xf32>
    %23 = arith.mulf %21, %22 : vector<1x256xf32>
    %cst_17 = arith.constant 9.99999974E-6 : f32
    %24 = vector.broadcast %cst_17 : f32 to vector<1x256xf32>
    %25 = arith.addf %23, %24 : vector<1x256xf32>
    %26 = math.rsqrt %25 : vector<1x256xf32>
    %27 = vector.broadcast %26 : vector<1x256xf32> to vector<8x256xf32>
    %28 = arith.mulf %18, %27 : vector<8x256xf32>
    %c0_18 = arith.constant 0 : index
    %c0_19 = arith.constant 0 : index
    %29 = vector.load %arg2[%c0_18, %c0_19] : memref<18x8xf32, #tpu.memory_space<vmem>>, vector<18x8xf32>
    %cst_20 = arith.constant dense<0.000000e+00> : vector<18x256xf32>
    %30 = tpu.matmul %29, %28, %cst_20 {dimension_numbers = #tpu.dot_dimension_numbers<[1], [0], [0], [1], [0, 0, 1, 1], [], []>} : vector<18x8xf32>, vector<8x256xf32>, vector<18x256xf32> -> vector<18x256xf32>
    %c0_21 = arith.constant 0 : index
    %c0_22 = arith.constant 0 : index
    %31 = vector.load %arg3[%c0_21, %c0_22] : memref<18x1xf32, #tpu.memory_space<vmem>>, vector<18x1xf32>
    %32 = vector.broadcast %31 : vector<18x1xf32> to vector<18x256xf32>
    %33 = arith.addf %30, %32 : vector<18x256xf32>
    %34 = math.tanh %33 : vector<18x256xf32>
    %c0_23 = arith.constant 0 : index
    %c0_24 = arith.constant 0 : index
    %35 = vector.load %arg4[%c0_23, %c0_24] : memref<7x18xf32, #tpu.memory_space<vmem>>, vector<7x18xf32>
    %cst_25 = arith.constant dense<0.000000e+00> : vector<7x256xf32>
    %36 = tpu.matmul %35, %34, %cst_25 {dimension_numbers = #tpu.dot_dimension_numbers<[1], [0], [0], [1], [0, 0, 1, 1], [], []>} : vector<7x18xf32>, vector<18x256xf32>, vector<7x256xf32> -> vector<7x256xf32>
    %c0_26 = arith.constant 0 : index
    %c0_27 = arith.constant 0 : index
    %37 = vector.load %arg5[%c0_26, %c0_27] : memref<7x1xf32, #tpu.memory_space<vmem>>, vector<7x1xf32>
    %38 = vector.broadcast %37 : vector<7x1xf32> to vector<7x256xf32>
    %39 = arith.addf %36, %38 : vector<7x256xf32>
    %40 = math.tanh %39 : vector<7x256xf32>
    %c0_28 = arith.constant 0 : index
    %c0_29 = arith.constant 0 : index
    %41 = vector.load %arg6[%c0_28, %c0_29] : memref<5x7xf32, #tpu.memory_space<vmem>>, vector<5x7xf32>
    %cst_30 = arith.constant dense<0.000000e+00> : vector<5x256xf32>
    %42 = tpu.matmul %41, %40, %cst_30 {dimension_numbers = #tpu.dot_dimension_numbers<[1], [0], [0], [1], [0, 0, 1, 1], [], []>} : vector<5x7xf32>, vector<7x256xf32>, vector<5x256xf32> -> vector<5x256xf32>
    %c0_31 = arith.constant 0 : index
    %c0_32 = arith.constant 0 : index
    %43 = vector.load %arg7[%c0_31, %c0_32] : memref<5x1xf32, #tpu.memory_space<vmem>>, vector<5x1xf32>
    %44 = vector.broadcast %43 : vector<5x1xf32> to vector<5x256xf32>
    %45 = arith.addf %42, %44 : vector<5x256xf32>
    %46 = math.tanh %45 : vector<5x256xf32>
    %c0_33 = arith.constant 0 : index
    %c0_34 = arith.constant 0 : index
    %47 = vector.load %arg8[%c0_33, %c0_34] : memref<5x1xf32, #tpu.memory_space<vmem>>, vector<5x1xf32>
    %48 = vector.broadcast %47 : vector<5x1xf32> to vector<5x256xf32>
    %49 = arith.mulf %48, %46 : vector<5x256xf32>
    %cst_35 = arith.constant dense<0.000000e+00> : vector<256xf32>
    %50 = vector.multi_reduction <add>, %49, %cst_35 [0] : vector<5x256xf32> to vector<256xf32>
    %51 = vector.shape_cast %50 : vector<256xf32> to vector<1x256xf32>
    %c0_36 = arith.constant 0 : index
    %c0_37 = arith.constant 0 : index
    %52 = vector.load %arg9[%c0_36, %c0_37] : memref<1x1xf32, #tpu.memory_space<vmem>>, vector<1x1xf32>
    %53 = vector.broadcast %52 : vector<1x1xf32> to vector<1x256xf32>
    %54 = arith.addf %51, %53 : vector<1x256xf32>
    %55 = math.tanh %54 : vector<1x256xf32>
    %cst_38 = arith.constant 1.800000e+01 : f32
    %56 = vector.broadcast %cst_38 : f32 to vector<1x256xf32>
    %57 = arith.mulf %55, %56 : vector<1x256xf32>
    %cst_39 = arith.constant 2.800000e+01 : f32
    %58 = vector.broadcast %cst_39 : f32 to vector<1x256xf32>
    %59 = arith.addf %58, %57 : vector<1x256xf32>
    %cst_40 = arith.constant 7.000000e+02 : f32
    %60 = vector.broadcast %cst_40 : f32 to vector<1x256xf32>
    %61 = arith.subf %2, %60 : vector<1x256xf32>
    %62 = arith.negf %61 : vector<1x256xf32>
    %63 = math.exp %62 : vector<1x256xf32>
    %cst_41 = arith.constant 1.000000e+00 : f32
    %64 = vector.broadcast %cst_41 : f32 to vector<1x256xf32>
    %65 = arith.addf %64, %63 : vector<1x256xf32>
    %66 = arith.divf %64, %65 : vector<1x256xf32>
    %cst_42 = arith.constant -2.500000e+00 : f32
    %67 = vector.broadcast %cst_42 : f32 to vector<1x256xf32>
    %68 = arith.mulf %67, %66 : vector<1x256xf32>
    %69 = arith.addf %59, %68 : vector<1x256xf32>
    %c0_43 = arith.constant 0 : index
    %c0_44 = arith.constant 0 : index
    %70 = vector.load %arg10[%c0_43, %c0_44] : memref<1x256xf32, #tpu.memory_space<vmem>>, vector<1x256xf32>
    tpu.vector_store %arg10[%c0_43, %c0_44], %69 {strides = array<i32>} : memref<1x256xf32, #tpu.memory_space<vmem>>, vector<1x256xf32>,
    return
  }
  func.func @transform_0(%arg0: i32) -> (i32, i32) {
    %c0_i32 = arith.constant 0 : i32
    %c0_i32_0 = arith.constant 0 : i32
    return %c0_i32, %arg0 : i32, i32
  }
  func.func @transform_1(%arg0: i32) -> (i32, i32) {
    %c0_i32 = arith.constant 0 : i32
    %c0_i32_0 = arith.constant 0 : i32
    %c0_i32_1 = arith.constant 0 : i32
    return %c0_i32, %c0_i32_0 : i32, i32
  }
  func.func @transform_2(%arg0: i32) -> (i32, i32) {
    %c0_i32 = arith.constant 0 : i32
    %c0_i32_0 = arith.constant 0 : i32
    %c0_i32_1 = arith.constant 0 : i32
    return %c0_i32, %c0_i32_0 : i32, i32
  }
  func.func @transform_3(%arg0: i32) -> (i32, i32) {
    %c0_i32 = arith.constant 0 : i32
    %c0_i32_0 = arith.constant 0 : i32
    %c0_i32_1 = arith.constant 0 : i32
    return %c0_i32, %c0_i32_0 : i32, i32
  }
  func.func @transform_4(%arg0: i32) -> (i32, i32) {
    %c0_i32 = arith.constant 0 : i32
    %c0_i32_0 = arith.constant 0 : i32
    %c0_i32_1 = arith.constant 0 : i32
    return %c0_i32, %c0_i32_0 : i32, i32
  }
  func.func @transform_5(%arg0: i32) -> (i32, i32) {
    %c0_i32 = arith.constant 0 : i32
    %c0_i32_0 = arith.constant 0 : i32
    %c0_i32_1 = arith.constant 0 : i32
    return %c0_i32, %c0_i32_0 : i32, i32
  }
  func.func @transform_6(%arg0: i32) -> (i32, i32) {
    %c0_i32 = arith.constant 0 : i32
    %c0_i32_0 = arith.constant 0 : i32
    %c0_i32_1 = arith.constant 0 : i32
    return %c0_i32, %c0_i32_0 : i32, i32
  }
  func.func @transform_7(%arg0: i32) -> (i32, i32) {
    %c0_i32 = arith.constant 0 : i32
    %c0_i32_0 = arith.constant 0 : i32
    %c0_i32_1 = arith.constant 0 : i32
    return %c0_i32, %c0_i32_0 : i32, i32
  }
  func.func @transform_8(%arg0: i32) -> (i32, i32) {
    %c0_i32 = arith.constant 0 : i32
    %c0_i32_0 = arith.constant 0 : i32
    %c0_i32_1 = arith.constant 0 : i32
    return %c0_i32, %c0_i32_0 : i32, i32
  }
  func.func @transform_9(%arg0: i32) -> (i32, i32) {
    %c0_i32 = arith.constant 0 : i32
    %c0_i32_0 = arith.constant 0 : i32
    return %c0_i32, %arg0 : i32, i32
  }
}

</mosaic_0001>

<llo_original>
// kernel: tpu_custom_call.1
$region0: #{tpu_custom_call.1}
  #allocation0 [shape = 'u32[]', space=smem, size = 0x4, offset = 0x4, fixed_abs, tag = 'smem constant byte address 0x4 - core index']
  #allocation1 [shape = 'u32[144,128]{1,0:T(1,128)}', space=vmem, size = 0x12000, scoped, tag = 'internal scratch']
  #allocation2 [shape = 'f32[8,256]{1,0:T(8,128)}', space=vmem, size = 0x2000, scoped, tag = 'scratch operand']
  #allocation3 [shape = 'f32[1,1]{1,0:T(1,128)S(1)}', space=vmem, size = 0x200, scoped, tag = 'scoped memory for tpu_custom_call.1']
  %s0 = inlined_call_operand.vmem [shape: f32[7,256], index: 0, kind: input, shape index: {}]
  %s1 = inlined_call_operand.vmem [shape: f32[18,8], index: 1, kind: input, shape index: {}]
  %s2 = inlined_call_operand.vmem [shape: f32[18,1], index: 2, kind: input, shape index: {}]
  %s3 = inlined_call_operand.vmem [shape: f32[7,18], index: 3, kind: input, shape index: {}]
  %s4 = inlined_call_operand.vmem [shape: f32[7,1], index: 4, kind: input, shape index: {}]
  %s5 = inlined_call_operand.vmem [shape: f32[5,7], index: 5, kind: input, shape index: {}]
  %s6 = inlined_call_operand.vmem [shape: f32[5,1], index: 6, kind: input, shape index: {}]
  %s7 = inlined_call_operand.vmem [shape: f32[5,1], index: 7, kind: input, shape index: {}]
  %s8 = inlined_call_operand.<no memory space> [shape: f32[1,1], index: 8, kind: input, shape index: {}]
  %s9 = inlined_call_operand.hbm [shape: f32[1,256], index: 9, kind: output, shape index: {}]
  %s10 = sld [smem:[#allocation0]]
  $region46: #{tpu_custom_call.1} parent=0
    _
  %s12 = ssub.s32 1, %s10
  %s13 = scalar_select 0, %s12, %s10
  %v14 = vstv %s8
  %15 = vst [vmem:[#allocation3] sm:$0x1] %v14
  $region1: #{tpu_custom_call.1} parent=0
    #allocation4 [shape = 'u8[1024]{0}', space=vmem, size = 0x400, scoped, tag = 'output window, operand 0, single buffered']
    #allocation5 [shape = 's32[1]{0}', space=sflag, size = 0x4, scoped, tag = 'scoped memory for tpu_custom_call.1']
    %16 = vsyncpa [#allocation5], 0
    // Predicated region
    $region2: #{tpu_custom_call.1} parent=1 // pred_check
      _
    $region3: #{tpu_custom_call.1} parent=1 // pred_check_branch
      %18 = sbr.rel (0) target = $region5
    $region4: #{tpu_custom_call.1} parent=1 // pred_region
      _
    $region5: #{tpu_custom_call.1} parent=1 // pred_fallthru
      _
    // Predicated region
    $region6: #{tpu_custom_call.1} parent=1 // pred_check
      _
    $region7: #{tpu_custom_call.1} parent=1 // pred_check_branch
      %20 = sbr.rel (0) target = $region9
    $region8: #{tpu_custom_call.1} parent=1 // pred_region
      _
    $region9: #{tpu_custom_call.1} parent=1 // pred_fallthru
      _
    // Predicated region
    $region10: #{tpu_custom_call.1} parent=1 // pred_check
      _
    $region11: #{tpu_custom_call.1} parent=1 // pred_check_branch
      %22 = sbr.rel (0) target = $region13
    $region12: #{tpu_custom_call.1} parent=1 // pred_region
      _
    $region13: #{tpu_custom_call.1} parent=1 // pred_fallthru
      _
    // Predicated region
    $region14: #{tpu_custom_call.1} parent=1 // pred_check
      _
    $region15: #{tpu_custom_call.1} parent=1 // pred_check_branch
      %24 = sbr.rel (0) target = $region17
    $region16: #{tpu_custom_call.1} parent=1 // pred_region
      _
    $region17: #{tpu_custom_call.1} parent=1 // pred_fallthru
      _
    // Predicated region
    $region18: #{tpu_custom_call.1} parent=1 // pred_check
      _
    $region19: #{tpu_custom_call.1} parent=1 // pred_check_branch
      %26 = sbr.rel (0) target = $region21
    $region20: #{tpu_custom_call.1} parent=1 // pred_region
      _
    $region21: #{tpu_custom_call.1} parent=1 // pred_fallthru
      _
    // Predicated region
    $region22: #{tpu_custom_call.1} parent=1 // pred_check
      _
    $region23: #{tpu_custom_call.1} parent=1 // pred_check_branch
      %28 = sbr.rel (0) target = $region25
    $region24: #{tpu_custom_call.1} parent=1 // pred_region
      _
    $region25: #{tpu_custom_call.1} parent=1 // pred_fallthru
      _
    // Predicated region
    $region26: #{tpu_custom_call.1} parent=1 // pred_check
      _
    $region27: #{tpu_custom_call.1} parent=1 // pred_check_branch
      %30 = sbr.rel (0) target = $region29
    $region28: #{tpu_custom_call.1} parent=1 // pred_region
      _
    $region29: #{tpu_custom_call.1} parent=1 // pred_fallthru
      _
    // Predicated region
    $region30: #{tpu_custom_call.1} parent=1 // pred_check
      _
    $region31: #{tpu_custom_call.1} parent=1 // pred_check_branch
      %32 = sbr.rel (0) target = $region33
    $region32: #{tpu_custom_call.1} parent=1 // pred_region
      _
    $region33: #{tpu_custom_call.1} parent=1 // pred_fallthru
      _
    // Predicated region
    $region34: #{tpu_custom_call.1} parent=1 // pred_check
      _
    $region35: #{tpu_custom_call.1} parent=1 // pred_check_branch
      %34 = sbr.rel (0) target = $region37
    $region36: #{tpu_custom_call.1} parent=1 // pred_region
      _
    $region37: #{tpu_custom_call.1} parent=1 // pred_fallthru
      _
    %v35 = vld [vmem:[%s0] sm:$0x1f]
    %v36 = vld [vmem:[%s0 + $0x8] sm:$0x1f]
    %37 = vst [vmem:[#allocation2] sm:$0x1f] %v35
    %38 = vst [vmem:[#allocation2 + $0x8] sm:$0x1f] %v36
    %s39 = scalar_lea.vmem %s0, 5
    %v40 = vld [vmem:[%s39] ss:$8 sm:$0x3]
    %v41 = vmul.f32 %v40, 0.01
    %s42 = scalar_lea.vmem %s0, 6
    %v43 = vld [vmem:[%s42] ss:$8 sm:$0x3]
    %v44 = vrcp.pop %v43
    %v45 = vmul.f32 1.0, %v44
    %v46 = vlaneseq
    %vm47 = vcmp.ge.s32.totalorder %v46, 0
    %vm48 = vcmp.lt.s32.totalorder %v46, 256
    %vm49 = vmand %vm47, %vm48
    %s50 = scalar_lea.vmem [#allocation2], 5
    %51 = vst.msk [vmem:[%s50] ss:$8 sm:$0x3] %vm49, %v41
    %52 = vst.msk [vmem:[%s50] ss:$8 sm:$0x0] %vm49, %v41
    %s53 = scalar_lea.vmem [#allocation2], 6
    %54 = vst.msk [vmem:[%s53] ss:$8 sm:$0x3] %vm49, %v45
    %55 = vst.msk [vmem:[%s53] ss:$8 sm:$0x0] %vm49, %v45
    %v56 = vmul.f32 %v41, %v45
    %s57 = scalar_lea.vmem [#allocation2], 7
    %58 = vst.msk [vmem:[%s57] ss:$8 sm:$0x3] %vm49, %v56
    %59 = vst.msk [vmem:[%s57] ss:$8 sm:$0x0] %vm49, %v56
    %v60 = vld [vmem:[#allocation2] sm:$0xff]
    %v61 = vld [vmem:[#allocation2 + $0x8] sm:$0xff]
    %v62 = vrot.slane %v60, 4
    %v63 = vadd.f32 %v60, %v62
    %v64 = vrot.slane %v63, 2
    %v65 = vadd.f32 %v63, %v64
    %v66 = vrot.slane %v65, 1
    %v67 = vadd.f32 %v65, %v66
    %v68 = vrot.slane %v61, 4
    %v69 = vadd.f32 %v61, %v68
    %v70 = vrot.slane %v69, 2
    %v71 = vadd.f32 %v69, %v70
    %v72 = vrot.slane %v71, 1
    %v73 = vadd.f32 %v71, %v72
    %v74 = vmul.f32 %v67, 0.125
    %v75 = vmul.f32 %v73, 0.125
    %v76 = vsub.f32 %v60, %v74
    %v77 = vsub.f32 %v61, %v75
    %v78 = vmul.f32 %v76, %v76
    %v79 = vmul.f32 %v77, %v77
    %v80 = vrot.slane %v78, 4
    %v81 = vadd.f32 %v78, %v80
    %v82 = vrot.slane %v81, 2
    %v83 = vadd.f32 %v81, %v82
    %v84 = vrot.slane %v83, 1
    %v85 = vadd.f32 %v83, %v84
    %v86 = vrot.slane %v79, 4
    %v87 = vadd.f32 %v79, %v86
    %v88 = vrot.slane %v87, 2
    %v89 = vadd.f32 %v87, %v88
    %v90 = vrot.slane %v89, 1
    %v91 = vadd.f32 %v89, %v90
    %v92 = vmul.f32 %v85, 0.125
    %v93 = vmul.f32 %v91, 0.125
    %v94 = vadd.f32 %v92, 1e-05
    %v95 = vadd.f32 %v93, 1e-05
    %v96 = vrsqrt.pop %v94
    %v97 = vrsqrt.pop %v95
    %v98 = vmul.f32 %v76, %v96
    %v99 = vmul.f32 %v77, %v97
    %v100 = vld [vmem:[%s1] sm:$0xff]
    %v101 = vld [vmem:[%s1 + $0x8] sm:$0xff]
    %v102 = vld [vmem:[%s1 + $0x10] sm:$0x3]
    %v103 = vld [vmem:[%s2] sm:$0xff]
    %v104 = vld [vmem:[%s2 + $0x8] sm:$0xff]
    %v105 = vld [vmem:[%s2 + $0x10] sm:$0x3]
    %107 = vset.pattern.permute.xlu0 0
    %108 = vperm.xlu0 %107, %v103
    %v109 = vpop.permute.xlu0 %108
    %112 = vset.pattern.permute.xlu0 0
    %113 = vperm.xlu0 %112, %v104
    %v114 = vpop.permute.xlu0 %113
    %117 = vset.pattern.permute.xlu0 0
    %118 = vperm.xlu0 %117, %v105
    %v119 = vpop.permute.xlu0 %118
    %vm121 = vcmask 64512
    %v123 = vsel %vm121, %v100, 0
    %v126 = vsel %vm121, %v101, 0
    %v129 = vsel %vm121, %v102, 0
    %131 = vmatprep.subr.mxu0 0.0
    %132 = vmatpush1.msra.mxu0 0.0
    %133 = vmatprep.subr.mxu0 0.0
    %134 = vmatpush1.msra.mxu0 0.0
    %135 = vmatprep.subr.mxu0 0.0
    %136 = vmatpush1.msra.mxu0 0.0
    %137 = vmatprep.subr.mxu0 0.0
    %138 = vmatpush1.msra.mxu0 0.0
    %139 = vmatprep.subr.mxu0 0.0
    %140 = vmatpush1.msra.mxu0 0.0
    %141 = vmatprep.subr.mxu0 0.0
    %142 = vmatpush1.msra.mxu0 0.0
    %143 = vmatprep.subr.mxu0 0.0
    %144 = vmatpush1.msra.mxu0 0.0
    %145 = vmatprep.subr.mxu0 0.0
    %146 = vmatpush1.msra.mxu0 0.0
    %147 = vmatprep.subr.mxu0 0.0
    %148 = vmatpush1.msra.mxu0 0.0
    %149 = vmatprep.subr.mxu0 0.0
    %150 = vmatpush1.msra.mxu0 0.0
    %151 = vmatprep.subr.mxu0 0.0
    %152 = vmatpush1.msra.mxu0 0.0
    %153 = vmatprep.subr.mxu0 0.0
    %154 = vmatpush1.msra.mxu0 0.0
    %155 = vmatprep.subr.mxu0 0.0
    %156 = vmatpush1.msra.mxu0 0.0
    %157 = vmatprep.subr.mxu0 0.0
    %158 = vmatpush1.msra.mxu0 0.0
    %159 = vmatprep.subr.mxu0 0.0
    %160 = vmatpush1.msra.mxu0 0.0
    %161 = vmatprep.subr.mxu0 %v99
    %162 = vmatpush1.msra.mxu0 %v98
    %163 = vmatprep.subr.mxu0 0.0
    %164 = vmatpush2.msra.mxu0 0.0
    %165 = vmatprep.subr.mxu0 0.0
    %166 = vmatpush2.msra.mxu0 0.0
    %167 = vmatprep.subr.mxu0 0.0
    %168 = vmatpush2.msra.mxu0 0.0
    %169 = vmatprep.subr.mxu0 0.0
    %170 = vmatpush2.msra.mxu0 0.0
    %171 = vmatprep.subr.mxu0 0.0
    %172 = vmatpush2.msra.mxu0 0.0
    %173 = vmatprep.subr.mxu0 0.0
    %174 = vmatpush2.msra.mxu0 0.0
    %175 = vmatprep.subr.mxu0 0.0
    %176 = vmatpush2.msra.mxu0 0.0
    %177 = vmatprep.subr.mxu0 0.0
    %178 = vmatpush2.msra.mxu0 0.0
    %179 = vmatprep.subr.mxu0 0.0
    %180 = vmatpush2.msra.mxu0 0.0
    %181 = vmatprep.subr.mxu0 0.0
    %182 = vmatpush2.msra.mxu0 0.0
    %183 = vmatprep.subr.mxu0 0.0
    %184 = vmatpush2.msra.mxu0 0.0
    %185 = vmatprep.subr.mxu0 0.0
    %186 = vmatpush2.msra.mxu0 0.0
    %187 = vmatprep.subr.mxu0 0.0
    %188 = vmatpush2.msra.mxu0 0.0
    %189 = vmatprep.subr.mxu0 0.0
    %190 = vmatpush2.msra.mxu0 0.0
    %191 = vmatprep.subr.mxu0 0.0
    %192 = vmatpush2.msra.mxu0 0.0
    %193 = vmatprep.subr.mxu0 0.0
    %194 = vmatpush2.msra.mxu0 0.0
    %195 = vmatprep.mubr.f32.mxu0 0.0
    %196 = vmatmul.mubr.f32.gmra.mxu0 %v123
    %v197 = vpop.f32.mrf.mxu0
    %v198 = vadd.f32 %v109, %v197
    %v199 = vpop.f32.mrf.mxu0
    %v200 = vadd.f32 %v109, %v199
    %201 = vmatprep.mubr.f32.mxu0 0.0
    %202 = vmatmul.mubr.f32.gmra.mxu0 %v126
    %v203 = vpop.f32.mrf.mxu0
    %v204 = vadd.f32 %v114, %v203
    %v205 = vpop.f32.mrf.mxu0
    %v206 = vadd.f32 %v114, %v205
    %207 = vmatprep.mubr.f32.mxu0 0.0
    %208 = vmatmul.mubr.f32.gmra.mxu0 %v129
    %v209 = vpop.f32.mrf.mxu0
    %v210 = vadd.f32 %v119, %v209
    %v211 = vpop.f32.mrf.mxu0
    %v212 = vadd.f32 %v119, %v211
    %213 = vdwg.mxu0
    %v214 = vtanh.pop %v198
    %v215 = vtanh.pop %v200
    %v216 = vtanh.pop %v204
    %v217 = vtanh.pop %v206
    %v218 = vtanh.pop %v210
    %v219 = vtanh.pop %v212
    %v220 = vld [vmem:[%s3] sm:$0x7f]
    %v221 = vld [vmem:[%s4] sm:$0x7f]
    %223 = vset.pattern.permute.xlu0 0
    %224 = vperm.xlu0 %223, %v221
    %v225 = vpop.permute.xlu0 %224
    %vm227 = vcmask 146432
    %v229 = vsel %vm227, %v220, 0
    %vm231 = vcmask 1041408
    %v233 = vsel %vm231, %v218, 0
    %v236 = vsel %vm231, %v219, 0
    %238 = vmatprep.subr.mxu0 0.0
    %239 = vmatpush1.msra.mxu0 0.0
    %240 = vmatprep.subr.mxu0 0.0
    %241 = vmatpush1.msra.mxu0 0.0
    %242 = vmatprep.subr.mxu0 0.0
    %243 = vmatpush1.msra.mxu0 0.0
    %244 = vmatprep.subr.mxu0 0.0
    %245 = vmatpush1.msra.mxu0 0.0
    %246 = vmatprep.subr.mxu0 0.0
    %247 = vmatpush1.msra.mxu0 0.0
    %248 = vmatprep.subr.mxu0 0.0
    %249 = vmatpush1.msra.mxu0 0.0
    %250 = vmatprep.subr.mxu0 0.0
    %251 = vmatpush1.msra.mxu0 0.0
    %252 = vmatprep.subr.mxu0 0.0
    %253 = vmatpush1.msra.mxu0 0.0
    %254 = vmatprep.subr.mxu0 0.0
    %255 = vmatpush1.msra.mxu0 0.0
    %256 = vmatprep.subr.mxu0 0.0
    %257 = vmatpush1.msra.mxu0 0.0
    %258 = vmatprep.subr.mxu0 0.0
    %259 = vmatpush1.msra.mxu0 0.0
    %260 = vmatprep.subr.mxu0 0.0
    %261 = vmatpush1.msra.mxu0 0.0
    %262 = vmatprep.subr.mxu0 0.0
    %263 = vmatpush1.msra.mxu0 0.0
    %264 = vmatprep.subr.mxu0 %v236
    %265 = vmatpush1.msra.mxu0 %v233
    %266 = vmatprep.subr.mxu0 %v217
    %267 = vmatpush1.msra.mxu0 %v216
    %268 = vmatprep.subr.mxu0 %v215
    %269 = vmatpush1.msra.mxu0 %v214
    %270 = vmatprep.subr.mxu0 0.0
    %271 = vmatpush2.msra.mxu0 0.0
    %272 = vmatprep.subr.mxu0 0.0
    %273 = vmatpush2.msra.mxu0 0.0
    %274 = vmatprep.subr.mxu0 0.0
    %275 = vmatpush2.msra.mxu0 0.0
    %276 = vmatprep.subr.mxu0 0.0
    %277 = vmatpush2.msra.mxu0 0.0
    %278 = vmatprep.subr.mxu0 0.0
    %279 = vmatpush2.msra.mxu0 0.0
    %280 = vmatprep.subr.mxu0 0.0
    %281 = vmatpush2.msra.mxu0 0.0
    %282 = vmatprep.subr.mxu0 0.0
    %283 = vmatpush2.msra.mxu0 0.0
    %284 = vmatprep.subr.mxu0 0.0
    %285 = vmatpush2.msra.mxu0 0.0
    %286 = vmatprep.subr.mxu0 0.0
    %287 = vmatpush2.msra.mxu0 0.0
    %288 = vmatprep.subr.mxu0 0.0
    %289 = vmatpush2.msra.mxu0 0.0
    %290 = vmatprep.subr.mxu0 0.0
    %291 = vmatpush2.msra.mxu0 0.0
    %292 = vmatprep.subr.mxu0 0.0
    %293 = vmatpush2.msra.mxu0 0.0
    %294 = vmatprep.subr.mxu0 0.0
    %295 = vmatpush2.msra.mxu0 0.0
    %296 = vmatprep.subr.mxu0 0.0
    %297 = vmatpush2.msra.mxu0 0.0
    %298 = vmatprep.subr.mxu0 0.0
    %299 = vmatpush2.msra.mxu0 0.0
    %300 = vmatprep.subr.mxu0 0.0
    %301 = vmatpush2.msra.mxu0 0.0
    %302 = vmatprep.mubr.f32.mxu0 0.0
    %303 = vmatmul.mubr.f32.gmra.mxu0 %v229
    %v304 = vpop.f32.mrf.mxu0
    %v305 = vadd.f32 %v225, %v304
    %v306 = vpop.f32.mrf.mxu0
    %v307 = vadd.f32 %v225, %v306
    %308 = vdwg.mxu0
    %v309 = vtanh.pop %v305
    %v310 = vtanh.pop %v307
    %v311 = vld [vmem:[%s5] sm:$0x1f]
    %v312 = vld [vmem:[%s6] sm:$0x1f]
    %314 = vset.pattern.permute.xlu0 0
    %315 = vperm.xlu0 %314, %v312
    %v316 = vpop.permute.xlu0 %315
    %vm318 = vcmask 56320
    %v320 = vsel %vm318, %v311, 0
    %vm322 = vcmask 1046528
    %v324 = vsel %vm322, %v309, 0
    %v327 = vsel %vm322, %v310, 0
    %329 = vmatprep.subr.mxu0 0.0
    %330 = vmatpush1.msra.mxu0 0.0
    %331 = vmatprep.subr.mxu0 0.0
    %332 = vmatpush1.msra.mxu0 0.0
    %333 = vmatprep.subr.mxu0 0.0
    %334 = vmatpush1.msra.mxu0 0.0
    %335 = vmatprep.subr.mxu0 0.0
    %336 = vmatpush1.msra.mxu0 0.0
    %337 = vmatprep.subr.mxu0 0.0
    %338 = vmatpush1.msra.mxu0 0.0
    %339 = vmatprep.subr.mxu0 0.0
    %340 = vmatpush1.msra.mxu0 0.0
    %341 = vmatprep.subr.mxu0 0.0
    %342 = vmatpush1.msra.mxu0 0.0
    %343 = vmatprep.subr.mxu0 0.0
    %344 = vmatpush1.msra.mxu0 0.0
    %345 = vmatprep.subr.mxu0 0.0
    %346 = vmatpush1.msra.mxu0 0.0
    %347 = vmatprep.subr.mxu0 0.0
    %348 = vmatpush1.msra.mxu0 0.0
    %349 = vmatprep.subr.mxu0 0.0
    %350 = vmatpush1.msra.mxu0 0.0
    %351 = vmatprep.subr.mxu0 0.0
    %352 = vmatpush1.msra.mxu0 0.0
    %353 = vmatprep.subr.mxu0 0.0
    %354 = vmatpush1.msra.mxu0 0.0
    %355 = vmatprep.subr.mxu0 0.0
    %356 = vmatpush1.msra.mxu0 0.0
    %357 = vmatprep.subr.mxu0 0.0
    %358 = vmatpush1.msra.mxu0 0.0
    %359 = vmatprep.subr.mxu0 %v327
    %360 = vmatpush1.msra.mxu0 %v324
    %361 = vmatprep.subr.mxu0 0.0
    %362 = vmatpush2.msra.mxu0 0.0
    %363 = vmatprep.subr.mxu0 0.0
    %364 = vmatpush2.msra.mxu0 0.0
    %365 = vmatprep.subr.mxu0 0.0
    %366 = vmatpush2.msra.mxu0 0.0
    %367 = vmatprep.subr.mxu0 0.0
    %368 = vmatpush2.msra.mxu0 0.0
    %369 = vmatprep.subr.mxu0 0.0
    %370 = vmatpush2.msra.mxu0 0.0
    %371 = vmatprep.subr.mxu0 0.0
    %372 = vmatpush2.msra.mxu0 0.0
    %373 = vmatprep.subr.mxu0 0.0
    %374 = vmatpush2.msra.mxu0 0.0
    %375 = vmatprep.subr.mxu0 0.0
    %376 = vmatpush2.msra.mxu0 0.0
    %377 = vmatprep.subr.mxu0 0.0
    %378 = vmatpush2.msra.mxu0 0.0
    %379 = vmatprep.subr.mxu0 0.0
    %380 = vmatpush2.msra.mxu0 0.0
    %381 = vmatprep.subr.mxu0 0.0
    %382 = vmatpush2.msra.mxu0 0.0
    %383 = vmatprep.subr.mxu0 0.0
    %384 = vmatpush2.msra.mxu0 0.0
    %385 = vmatprep.subr.mxu0 0.0
    %386 = vmatpush2.msra.mxu0 0.0
    %387 = vmatprep.subr.mxu0 0.0
    %388 = vmatpush2.msra.mxu0 0.0
    %389 = vmatprep.subr.mxu0 0.0
    %390 = vmatpush2.msra.mxu0 0.0
    %391 = vmatprep.subr.mxu0 0.0
    %392 = vmatpush2.msra.mxu0 0.0
    %393 = vmatprep.mubr.f32.mxu0 0.0
    %394 = vmatmul.mubr.f32.gmra.mxu0 %v320
    %v395 = vpop.f32.mrf.mxu0
    %v396 = vadd.f32 %v316, %v395
    %v397 = vpop.f32.mrf.mxu0
    %v398 = vadd.f32 %v316, %v397
    %399 = vdwg.mxu0
    %v400 = vtanh.pop %v396
    %v401 = vtanh.pop %v398
    %v402 = vld [vmem:[%s7] sm:$0x1f]
    %404 = vset.pattern.permute.xlu0 0
    %405 = vperm.xlu0 %404, %v402
    %v406 = vpop.permute.xlu0 %405
    %v408 = vmul.f32 %v406, %v400
    %v409 = vmul.f32 %v406, %v401
    %vm410 = vcmask 1044480
    %v411 = vsel %vm410, %v408, 0.0
    %v412 = vrot.slane %v411, 4
    %v413 = vadd.f32 %v411, %v412
    %v414 = vrot.slane %v413, 2
    %v415 = vadd.f32 %v413, %v414
    %v416 = vrot.slane %v415, 1
    %v417 = vadd.f32 %v415, %v416
    %v418 = vsel %vm410, %v409, 0.0
    %v419 = vrot.slane %v418, 4
    %v420 = vadd.f32 %v418, %v419
    %v421 = vrot.slane %v420, 2
    %v422 = vadd.f32 %v420, %v421
    %v423 = vrot.slane %v422, 1
    %v424 = vadd.f32 %v422, %v423
    %v425 = vld [vmem:[#allocation3] sm:$0x1]
    %427 = vset.pattern.permute.xlu0 0
    %428 = vperm.xlu0 %427, %v425
    %v429 = vpop.permute.xlu0 %428
    %v431 = vlaneseq
    %v432 = vshrl.u32 %v431, 7
    %v433 = vsub.s32 0, %v432
    %v434 = vrot.slane %v429, %v433
    %v435 = vadd.f32 %v417, %v434
    %v436 = vadd.f32 %v424, %v434
    %v437 = vtanh.pop %v435
    %v438 = vtanh.pop %v436
    %v439 = vmul.f32 %v437, 18.0
    %v440 = vmul.f32 %v438, 18.0
    %v441 = vadd.f32 %v439, 28.0
    %v442 = vadd.f32 %v440, 28.0
    %v443 = vsub.f32 %v40, 700.0
    %v444 = vxor.u32 %v443, 2147483648
    %v445 = vmul.f32 %v444, 1.442695
    %v446 = vpow.pop %v445
    %v447 = vadd.f32 %v446, 1.0
    %v448 = vrcp.pop %v447
    %v449 = vmul.f32 1.0, %v448
    %v450 = vmul.f32 %v449, -2.5
    %v452 = vlaneseq
    %v453 = vshrl.u32 %v452, 7
    %v454 = vsub.s32 0, %v453
    %v455 = vrot.slane %v450, %v454
    %v456 = vlaneseq
    %v457 = vshrl.u32 %v456, 7
    %v458 = vsub.s32 1, %v457
    %v459 = vrot.slane %v450, %v458
    %v462 = vadd.f32 %v441, %v455
    %v463 = vadd.f32 %v442, %v459
    %v466 = vcombine.low %v462, %v463
    %v468 = vunpack.c.l.s4 1966171168
    %v469 = vunpack.c.0.s8 %v468
    %v470 = vlaneseq
    %v471 = vshrl.u32 %v470, 7
    %v472 = vsub.s32 %v469, %v471
    %v473 = vrot.slane %v466, %v472
    %v475 = vunpack.c.l.s4 1966171168
    %v476 = vunpack.c.0.s8 %v475
    %v477 = vlaneseq
    %v478 = vshrl.u32 %v477, 7
    %v479 = vsub.s32 %v476, %v478
    %v480 = vrot.slane %v473, %v479
    %482 = vst.msk [vmem:[#allocation4] sm:$0x3] %vm49, %v480
    // Predicated region
    $region38: #{tpu_custom_call.1} parent=1 // pred_check
      _
    $region39: #{tpu_custom_call.1} parent=1 // pred_check_branch
      %484 = sbr.rel (0) target = $region41
    $region40: #{tpu_custom_call.1} parent=1 // pred_region
      %s486 = ssub.s32 32, 32
      %487 = vsyncadd [#allocation5], %s486
      %s489 = sshll.u32 [#allocation4], 4
      %s490 = int_to_ptr.vmem [resolvable:$true] %s489
      %492 = dma.vmem_to_hbm [thread:$0]  %s490, 32, %s9, [#allocation5]
    $region41: #{tpu_custom_call.1} parent=1 // pred_fallthru
      _
    // Predicated region
    $region42: #{tpu_custom_call.1} parent=1 // pred_check
      _
    $region43: #{tpu_custom_call.1} parent=1 // pred_check_branch
      %494 = sbr.rel (0) target = $region45
    $region44: #{tpu_custom_call.1} parent=1 // pred_region
      %495 = dma.done [#allocation5], 32
    $region45: #{tpu_custom_call.1} parent=1 // pred_fallthru
      _
    %496 = vsyncpa [#allocation5], 1

</llo_original>
